<compile_context>
chip_gen: v5e
topology: v5e:2x2
jax: 0.10.0
libtpu: 0.0.40
codegen_flags: <defaults>
</compile_context>

<pallas_src>
import functools
import re

import jax
import jax.numpy as jnp
from jax.experimental import pallas as pl
from jax.experimental.pallas import tpu as pltpu

_PARAM_ORDER = ("wqkv", "bqkv", "wo", "bo", "w1", "b1", "w2", "b2", "g1", "be1", "g2", "be2")


def _tpu_generation():
    """Best-effort TPU generation (5, 6, 7, ...) from the device kind string; None if unknown."""
    try:
        kind = jax.devices()[0].device_kind
    except Exception:
        return None
    m = re.search(r"v(\d+)", str(kind).lower())
    return int(m.group(1)) if m else None


def _layer_norm(z, gamma, beta, eps=1e-5):
    mu = jnp.mean(z, axis=-1, keepdims=True)
    var = jnp.mean(jnp.square(z - mu), axis=-1, keepdims=True)
    return (z - mu) * jax.lax.rsqrt(var + eps) * gamma + beta


def transformer_block_kernel(x_ref,
                             wqkv_ref, bqkv_ref, wo_ref, bo_ref,
                             w1_ref, b1_ref, w2_ref, b2_ref,
                             g1_ref, be1_ref, g2_ref, be2_ref,
                             o_ref, *, num_heads, compute_dtype, exp_dtype):
    bt, S, D = x_ref.shape
    dh = D // num_heads
    n = bt * S

    x = x_ref[...].reshape(n, D)                       # (n, D) fp32; leading-dim merge only
    xc = x.astype(compute_dtype)

    # ---- fused Q/K/V projection: one (n, D) @ (D, 3D) MXU pass; scale folded into Q columns ----
    qkv = (jnp.dot(xc, wqkv_ref[...], preferred_element_type=jnp.float32)
           + bqkv_ref[...]).astype(compute_dtype)       # (n, 3D)

    # ---- attention: per-head 3-D einsums (batch = bt); deferred softmax normalization ----
    head_outs = []
    for h in range(num_heads):                          # static, small
        lo, hi = h * dh, (h + 1) * dh
        qh = qkv[:, lo:hi].reshape(bt, S, dh)
        kh = qkv[:, D + lo:D + hi].reshape(bt, S, dh)
        vh = qkv[:, 2 * D + lo:2 * D + hi].reshape(bt, S, dh)
        s = jnp.einsum("bqd,bkd->bqk", qh, kh,
                       preferred_element_type=jnp.float32)            # (bt, S, S) fp32
        s = s - jnp.max(s, axis=-1, keepdims=True)
        p = jnp.exp(s.astype(exp_dtype))                               # bf16 exp on v6e/v7x
        l = jnp.sum(p.astype(jnp.float32), axis=-1, keepdims=True)     # (bt, S, 1) fp32
        oh = jnp.einsum("bqk,bkd->bqd", p.astype(compute_dtype), vh,
                        preferred_element_type=jnp.float32)            # unnormalized P @ V
        head_outs.append(oh / l)                                       # normalize (S,dh), not (S,S)

    # ---- single full-depth out-projection on the concatenated heads ----
    ctx = jnp.concatenate(head_outs, axis=-1).reshape(n, D).astype(compute_dtype)
    attn = jnp.dot(ctx, wo_ref[...], preferred_element_type=jnp.float32) + bo_ref[...]

    # ---- residual + LayerNorm 1 (dropout == identity in eval mode) ----
    y = _layer_norm(x + attn, g1_ref[...], be1_ref[...])

    # ---- feedforward: Linear -> ReLU -> Linear (pre-transposed weights) ----
    h1 = jnp.dot(y.astype(compute_dtype), w1_ref[...],
                 preferred_element_type=jnp.float32) + b1_ref[...]
    h1 = jnp.maximum(h1, 0.0).astype(compute_dtype)
    ff = jnp.dot(h1, w2_ref[...],
                 preferred_element_type=jnp.float32) + b2_ref[...]

    # ---- residual + LayerNorm 2 ----
    out = _layer_norm(y + ff, g2_ref[...], be2_ref[...])
    o_ref[...] = out.reshape(bt, S, D).astype(o_ref.dtype)


def prepare_params(params, num_heads, compute_dtype=jnp.bfloat16):
    """Convert PyTorch-layout params into kernel layout. Call ONCE and reuse across calls."""
    wqkv = jnp.asarray(params["wqkv"])                  # (3D, D) == in_proj_weight
    bqkv = jnp.asarray(params["bqkv"]).reshape(-1)      # (3D,)
    D = wqkv.shape[1]
    F = params["w1"].shape[0]
    assert D % num_heads == 0, "d_model must be divisible by num_heads"
    dh = D // num_heads
    scale = 1.0 / (dh ** 0.5)
    f32 = jnp.float32
    wq, wk, wv = wqkv[:D], wqkv[D:2 * D], wqkv[2 * D:]
    bq, bk, bv = bqkv[:D], bqkv[D:2 * D], bqkv[2 * D:]
    wqkv_fused = jnp.concatenate([wq.T * scale, wk.T, wv.T], axis=1)       # (D, 3D)
    bqkv_fused = jnp.concatenate([bq * scale, bk, bv]).reshape(1, 3 * D)   # (1, 3D)
    return {
        "wqkv": wqkv_fused.astype(compute_dtype),
        "bqkv": bqkv_fused.astype(f32),
        "wo": params["wo"].T.astype(compute_dtype),                        # (D, D) == Wo^T
        "bo": params["bo"].reshape(1, D).astype(f32),
        "w1": params["w1"].T.astype(compute_dtype),                        # (D, F)
        "b1": params["b1"].reshape(1, F).astype(f32),
        "w2": params["w2"].T.astype(compute_dtype),                        # (F, D)
        "b2": params["b2"].reshape(1, D).astype(f32),
        "g1": params["g1"].reshape(1, D).astype(f32),
        "be1": params["be1"].reshape(1, D).astype(f32),
        "g2": params["g2"].reshape(1, D).astype(f32),
        "be2": params["be2"].reshape(1, D).astype(f32),
    }


def transformer_block(x, kparams, num_heads, *, compute_dtype=jnp.bfloat16, block_b=None):
    """x: (B, S, D) fp32; kparams: output of prepare_params (already converted/pre-transposed)."""
    B, S, D = x.shape
    F = kparams["w1"].shape[1]
    assert D % num_heads == 0, "d_model must be divisible by num_heads"

    gen = _tpu_generation()
    # Physical VMEM: 128 MiB/core on v5e/v6e, 64 MiB/core on v7x; conservative when unknown.
    phys_vmem = (128 << 20) if gen in (5, 6) else (64 << 20)
    vmem_cap = int(phys_vmem * 0.8)
    exp_dtype = jnp.bfloat16 if (gen is not None and gen >= 6) else jnp.float32
    min_steps = 2 if (gen is not None and gen >= 7) else 1   # keep both v7x TensorCores busy

    wbytes = jnp.dtype(compute_dtype).itemsize
    weight_bytes = (4 * D * D + 2 * D * F) * wbytes + (9 * D + F) * 4
    resident_weight_bytes = 2 * weight_bytes                 # pipeline double-buffers each operand

    def act_bytes(bt):
        # fp32-equivalent estimate of the per-step working set (qkv, per-head scores, concat ctx,
        # y, ffn intermediates) plus the double-buffered input/output blocks.
        n = bt * S
        return 4 * n * (16 * D + 2 * S + 2 * F) + 16 * n * D

    if block_b is None:
        act_budget = max(vmem_cap - resident_weight_bytes - (4 << 20), 4 << 20)
        divs = [c for c in range(1, B + 1) if B % c == 0]
        cands = [c for c in divs if B // c >= min_steps] or divs
        block_b = 1
        for c in sorted(cands, reverse=True):    # largest block first: maximize n = block_b*S
            if act_bytes(c) <= act_budget:
                block_b = c
                break
    assert B % block_b == 0

    vmem_limit = int(min(vmem_cap,
                         max(32 << 20, resident_weight_bytes + act_bytes(block_b) + (4 << 20))))

    kernel = functools.partial(transformer_block_kernel, num_heads=num_heads,
                               compute_dtype=compute_dtype, exp_dtype=exp_dtype)

    # Weight/bias blocks: full-shape blocks with a constant block index across the whole grid
    # -> fetched once by the pipeline (no refetch on later steps).
    weight_specs = [
        pl.BlockSpec(kparams[name].shape, lambda b, _nd=kparams[name].ndim: (0,) * _nd)
        for name in _PARAM_ORDER
    ]

    fn = pl.pallas_call(
        kernel,
        out_shape=jax.ShapeDtypeStruct((B, S, D), x.dtype),
        grid_spec=pltpu.PrefetchScalarGridSpec(
            num_scalar_prefetch=0,
            grid=(B // block_b,),
            in_specs=[pl.BlockSpec((block_b, S, D), lambda b: (b, 0, 0))] + weight_specs,
            out_specs=pl.BlockSpec((block_b, S, D), lambda b: (b, 0, 0)),
        ),
        compiler_params=pltpu.CompilerParams(
            dimension_semantics=("parallel",),
            vmem_limit_bytes=vmem_limit,
        ),
    )
    return fn(x, *(kparams[name] for name in _PARAM_ORDER))


def transformer_block_reference(x, params, num_heads):
    """Pure-JAX fp32 reference matching nn.MultiheadAttention / the PyTorch block (eval mode)."""
    B, S, D = x.shape
    dh = D // num_heads
    wqkv, bqkv = params["wqkv"], params["bqkv"]
    q = x @ wqkv[:D].T + bqkv[:D]
    k = x @ wqkv[D:2 * D].T + bqkv[D:2 * D]
    v = x @ wqkv[2 * D:].T + bqkv[2 * D:]
    q = q.reshape(B, S, num_heads, dh).transpose(0, 2, 1, 3) / jnp.sqrt(float(dh))
    k = k.reshape(B, S, num_heads, dh).transpose(0, 2, 1, 3)
    v = v.reshape(B, S, num_heads, dh).transpose(0, 2, 1, 3)
    s = jnp.einsum("bhqd,bhkd->bhqk", q, k)
    p = jax.nn.softmax(s, axis=-1)
    o = jnp.einsum("bhqk,bhkd->bhqd", p, v).transpose(0, 2, 1, 3).reshape(B, S, D)
    attn = o @ params["wo"].T + params["bo"]

    def ln(z, g, b):
        mu = z.mean(-1, keepdims=True)
        var = ((z - mu) ** 2).mean(-1, keepdims=True)
        return (z - mu) / jnp.sqrt(var + 1e-5) * g + b

    y = ln(x + attn, params["g1"], params["be1"])
    h = jnp.maximum(y @ params["w1"].T + params["b1"], 0.0)
    ff = h @ params["w2"].T + params["b2"]
    return ln(y + ff, params["g2"], params["be2"])


def init_params(key, d_model, num_heads, dim_feedforward):
    # PyTorch-layout parameters (same conventions as nn.MultiheadAttention / nn.Linear).
    ks = jax.random.split(key, 8)
    s = 0.02
    return {
        "wqkv": s * jax.random.normal(ks[0], (3 * d_model, d_model), jnp.float32),
        "bqkv": s * jax.random.normal(ks[1], (3 * d_model,), jnp.float32),
        "wo":   s * jax.random.normal(ks[2], (d_model, d_model), jnp.float32),
        "bo":   s * jax.random.normal(ks[3], (d_model,), jnp.float32),
        "w1":   s * jax.random.normal(ks[4], (dim_feedforward, d_model), jnp.float32),
        "b1":   s * jax.random.normal(ks[5], (dim_feedforward,), jnp.float32),
        "w2":   s * jax.random.normal(ks[6], (d_model, dim_feedforward), jnp.float32),
        "b2":   s * jax.random.normal(ks[7], (d_model,), jnp.float32),
        "g1":   jnp.ones((d_model,), jnp.float32),
        "be1":  jnp.zeros((d_model,), jnp.float32),
        "g2":   jnp.ones((d_model,), jnp.float32),
        "be2":  jnp.zeros((d_model,), jnp.float32),
    }


if __name__ == "__main__":
    B, S, d_model, num_heads, dim_ff = 2, 8, 32, 4, 64
    key = jax.random.PRNGKey(0)
    kx, kparam = jax.random.split(key)
    x = jax.random.normal(kx, (B, S, d_model), jnp.float32)
    params = init_params(kparam, d_model, num_heads, dim_ff)

    # Hoisted weight conversion: done once, reused across calls (no per-call transpose/cast).
    kparams = prepare_params(params, num_heads)

    out = jax.block_until_ready(transformer_block(x, kparams, num_heads))

    assert out.shape == (B, S, d_model) and out.dtype == jnp.float32
    assert bool(jnp.all(jnp.isfinite(out)))
    ref = transformer_block_reference(x, params, num_heads)
    assert bool(jnp.allclose(out, ref, atol=3e-2, rtol=3e-2)), float(jnp.max(jnp.abs(out - ref)))
    print("KERNEL_OK")
</pallas_src>

<mosaic_0001>
module attributes {stable_mosaic.version = 11 : i64} {
  func.func @transformer_block_kernel(%arg0: i32, %arg1: memref<2x8x32xf32, #tpu.memory_space<vmem>>, %arg2: memref<32x96xbf16, #tpu.memory_space<vmem>>, %arg3: memref<1x96xf32, #tpu.memory_space<vmem>>, %arg4: memref<32x32xbf16, #tpu.memory_space<vmem>>, %arg5: memref<1x32xf32, #tpu.memory_space<vmem>>, %arg6: memref<32x64xbf16, #tpu.memory_space<vmem>>, %arg7: memref<1x64xf32, #tpu.memory_space<vmem>>, %arg8: memref<64x32xbf16, #tpu.memory_space<vmem>>, %arg9: memref<1x32xf32, #tpu.memory_space<vmem>>, %arg10: memref<1x32xf32, #tpu.memory_space<vmem>>, %arg11: memref<1x32xf32, #tpu.memory_space<vmem>>, %arg12: memref<1x32xf32, #tpu.memory_space<vmem>>, %arg13: memref<1x32xf32, #tpu.memory_space<vmem>>, %arg14: memref<2x8x32xf32, #tpu.memory_space<vmem>>) attributes {dimension_semantics = [#tpu.dimension_semantics<parallel>], iteration_bounds = array<i64: 1>, scalar_prefetch = 0 : i64, scratch_operands = 0 : i64, tpu.core_type = #tpu.core_type<tc>, window_params = [{transform_indices = @transform_0, window_bounds = array<i64: 2, 8, 32>}, {pipeline_mode = #tpu.pipeline_mode<synchronous>, transform_indices = @transform_1, window_bounds = array<i64: 32, 96>}, {pipeline_mode = #tpu.pipeline_mode<synchronous>, transform_indices = @transform_2, window_bounds = array<i64: 1, 96>}, {pipeline_mode = #tpu.pipeline_mode<synchronous>, transform_indices = @transform_3, window_bounds = array<i64: 32, 32>}, {pipeline_mode = #tpu.pipeline_mode<synchronous>, transform_indices = @transform_4, window_bounds = array<i64: 1, 32>}, {pipeline_mode = #tpu.pipeline_mode<synchronous>, transform_indices = @transform_5, window_bounds = array<i64: 32, 64>}, {pipeline_mode = #tpu.pipeline_mode<synchronous>, transform_indices = @transform_6, window_bounds = array<i64: 1, 64>}, {pipeline_mode = #tpu.pipeline_mode<synchronous>, transform_indices = @transform_7, window_bounds = array<i64: 64, 32>}, {pipeline_mode = #tpu.pipeline_mode<synchronous>, transform_indices = @transform_8, window_bounds = array<i64: 1, 32>}, {pipeline_mode = #tpu.pipeline_mode<synchronous>, transform_indices = @transform_9, window_bounds = array<i64: 1, 32>}, {pipeline_mode = #tpu.pipeline_mode<synchronous>, transform_indices = @transform_10, window_bounds = array<i64: 1, 32>}, {pipeline_mode = #tpu.pipeline_mode<synchronous>, transform_indices = @transform_11, window_bounds = array<i64: 1, 32>}, {pipeline_mode = #tpu.pipeline_mode<synchronous>, transform_indices = @transform_12, window_bounds = array<i64: 1, 32>}, {transform_indices = @transform_13, window_bounds = array<i64: 2, 8, 32>}]} {
    %c0 = arith.constant 0 : index
    %c0_0 = arith.constant 0 : index
    %c0_1 = arith.constant 0 : index
    %0 = vector.load %arg1[%c0, %c0_0, %c0_1] : memref<2x8x32xf32, #tpu.memory_space<vmem>>, vector<2x8x32xf32>
    %1 = vector.shape_cast %0 : vector<2x8x32xf32> to vector<16x32xf32>
    %2 = arith.truncf %1 : vector<16x32xf32> to vector<16x32xbf16>
    %c0_2 = arith.constant 0 : index
    %c0_3 = arith.constant 0 : index
    %3 = vector.load %arg2[%c0_2, %c0_3] : memref<32x96xbf16, #tpu.memory_space<vmem>>, vector<32x96xbf16>
    %cst = arith.constant dense<0.000000e+00> : vector<16x96xf32>
    %4 = tpu.matmul %2, %3, %cst {dimension_numbers = #tpu.dot_dimension_numbers<[1], [0], [0], [1], [0, 0, 1, 1], [], []>} : vector<16x32xbf16>, vector<32x96xbf16>, vector<16x96xf32> -> vector<16x96xf32>
    %c0_4 = arith.constant 0 : index
    %c0_5 = arith.constant 0 : index
    %5 = vector.load %arg3[%c0_4, %c0_5] : memref<1x96xf32, #tpu.memory_space<vmem>>, vector<1x96xf32>
    %6 = vector.broadcast %5 : vector<1x96xf32> to vector<16x96xf32>
    %7 = arith.addf %4, %6 : vector<16x96xf32>
    %8 = arith.truncf %7 : vector<16x96xf32> to vector<16x96xbf16>
    %9 = vector.extract_strided_slice %8 {offsets = [0, 0], sizes = [16, 8], strides = [1, 1]} : vector<16x96xbf16> to vector<16x8xbf16>
    %10 = vector.shape_cast %9 : vector<16x8xbf16> to vector<2x8x8xbf16>
    %11 = vector.extract_strided_slice %8 {offsets = [0, 32], sizes = [16, 8], strides = [1, 1]} : vector<16x96xbf16> to vector<16x8xbf16>
    %12 = vector.shape_cast %11 : vector<16x8xbf16> to vector<2x8x8xbf16>
    %13 = vector.extract_strided_slice %8 {offsets = [0, 64], sizes = [16, 8], strides = [1, 1]} : vector<16x96xbf16> to vector<16x8xbf16>
    %14 = vector.shape_cast %13 : vector<16x8xbf16> to vector<2x8x8xbf16>
    "tpu.trace_start"() <{level = 10 : i32, message = "bqd,bkd->bqk"}> : () -> ()
    %cst_6 = arith.constant dense<0.000000e+00> : vector<2x8x8xf32>
    %15 = tpu.matmul %10, %12, %cst_6 {dimension_numbers = #tpu.dot_dimension_numbers<[2], [2], [1], [1], [0, 0, 0, 1, 1, 1], [0], [0]>} : vector<2x8x8xbf16>, vector<2x8x8xbf16>, vector<2x8x8xf32> -> vector<2x8x8xf32>
    "tpu.trace_stop"() : () -> ()
    %cst_7 = arith.constant dense<0xFF800000> : vector<2x8xf32>
    %16 = vector.multi_reduction <maximumf>, %15, %cst_7 [2] : vector<2x8x8xf32> to vector<2x8xf32>
    %17 = vector.shape_cast %16 : vector<2x8xf32> to vector<2x8x1xf32>
    %18 = vector.broadcast %17 : vector<2x8x1xf32> to vector<2x8x8xf32>
    %19 = arith.subf %15, %18 : vector<2x8x8xf32>
    %20 = math.exp %19 : vector<2x8x8xf32>
    %cst_8 = arith.constant dense<0.000000e+00> : vector<2x8xf32>
    %21 = vector.multi_reduction <add>, %20, %cst_8 [2] : vector<2x8x8xf32> to vector<2x8xf32>
    %22 = vector.shape_cast %21 : vector<2x8xf32> to vector<2x8x1xf32>
    %23 = arith.truncf %20 : vector<2x8x8xf32> to vector<2x8x8xbf16>
    "tpu.trace_start"() <{level = 10 : i32, message = "bqk,bkd->bqd"}> : () -> ()
    %cst_9 = arith.constant dense<0.000000e+00> : vector<2x8x8xf32>
    %24 = tpu.matmul %23, %14, %cst_9 {dimension_numbers = #tpu.dot_dimension_numbers<[2], [1], [1], [2], [0, 0, 0, 1, 1, 2], [0], [0]>} : vector<2x8x8xbf16>, vector<2x8x8xbf16>, vector<2x8x8xf32> -> vector<2x8x8xf32>
    "tpu.trace_stop"() : () -> ()
    %25 = vector.broadcast %22 : vector<2x8x1xf32> to vector<2x8x8xf32>
    %26 = arith.divf %24, %25 : vector<2x8x8xf32>
    %27 = vector.extract_strided_slice %8 {offsets = [0, 8], sizes = [16, 8], strides = [1, 1]} : vector<16x96xbf16> to vector<16x8xbf16>
    %28 = vector.shape_cast %27 : vector<16x8xbf16> to vector<2x8x8xbf16>
    %29 = vector.extract_strided_slice %8 {offsets = [0, 40], sizes = [16, 8], strides = [1, 1]} : vector<16x96xbf16> to vector<16x8xbf16>
    %30 = vector.shape_cast %29 : vector<16x8xbf16> to vector<2x8x8xbf16>
    %31 = vector.extract_strided_slice %8 {offsets = [0, 72], sizes = [16, 8], strides = [1, 1]} : vector<16x96xbf16> to vector<16x8xbf16>
    %32 = vector.shape_cast %31 : vector<16x8xbf16> to vector<2x8x8xbf16>
    "tpu.trace_start"() <{level = 10 : i32, message = "bqd,bkd->bqk"}> : () -> ()
    %cst_10 = arith.constant dense<0.000000e+00> : vector<2x8x8xf32>
    %33 = tpu.matmul %28, %30, %cst_10 {dimension_numbers = #tpu.dot_dimension_numbers<[2], [2], [1], [1], [0, 0, 0, 1, 1, 1], [0], [0]>} : vector<2x8x8xbf16>, vector<2x8x8xbf16>, vector<2x8x8xf32> -> vector<2x8x8xf32>
    "tpu.trace_stop"() : () -> ()
    %cst_11 = arith.constant dense<0xFF800000> : vector<2x8xf32>
    %34 = vector.multi_reduction <maximumf>, %33, %cst_11 [2] : vector<2x8x8xf32> to vector<2x8xf32>
    %35 = vector.shape_cast %34 : vector<2x8xf32> to vector<2x8x1xf32>
    %36 = vector.broadcast %35 : vector<2x8x1xf32> to vector<2x8x8xf32>
    %37 = arith.subf %33, %36 : vector<2x8x8xf32>
    %38 = math.exp %37 : vector<2x8x8xf32>
    %cst_12 = arith.constant dense<0.000000e+00> : vector<2x8xf32>
    %39 = vector.multi_reduction <add>, %38, %cst_12 [2] : vector<2x8x8xf32> to vector<2x8xf32>
    %40 = vector.shape_cast %39 : vector<2x8xf32> to vector<2x8x1xf32>
    %41 = arith.truncf %38 : vector<2x8x8xf32> to vector<2x8x8xbf16>
    "tpu.trace_start"() <{level = 10 : i32, message = "bqk,bkd->bqd"}> : () -> ()
    %cst_13 = arith.constant dense<0.000000e+00> : vector<2x8x8xf32>
    %42 = tpu.matmul %41, %32, %cst_13 {dimension_numbers = #tpu.dot_dimension_numbers<[2], [1], [1], [2], [0, 0, 0, 1, 1, 2], [0], [0]>} : vector<2x8x8xbf16>, vector<2x8x8xbf16>, vector<2x8x8xf32> -> vector<2x8x8xf32>
    "tpu.trace_stop"() : () -> ()
    %43 = vector.broadcast %40 : vector<2x8x1xf32> to vector<2x8x8xf32>
    %44 = arith.divf %42, %43 : vector<2x8x8xf32>
    %45 = vector.extract_strided_slice %8 {offsets = [0, 16], sizes = [16, 8], strides = [1, 1]} : vector<16x96xbf16> to vector<16x8xbf16>
    %46 = vector.shape_cast %45 : vector<16x8xbf16> to vector<2x8x8xbf16>
    %47 = vector.extract_strided_slice %8 {offsets = [0, 48], sizes = [16, 8], strides = [1, 1]} : vector<16x96xbf16> to vector<16x8xbf16>
    %48 = vector.shape_cast %47 : vector<16x8xbf16> to vector<2x8x8xbf16>
    %49 = vector.extract_strided_slice %8 {offsets = [0, 80], sizes = [16, 8], strides = [1, 1]} : vector<16x96xbf16> to vector<16x8xbf16>
    %50 = vector.shape_cast %49 : vector<16x8xbf16> to vector<2x8x8xbf16>
    "tpu.trace_start"() <{level = 10 : i32, message = "bqd,bkd->bqk"}> : () -> ()
    %cst_14 = arith.constant dense<0.000000e+00> : vector<2x8x8xf32>
    %51 = tpu.matmul %46, %48, %cst_14 {dimension_numbers = #tpu.dot_dimension_numbers<[2], [2], [1], [1], [0, 0, 0, 1, 1, 1], [0], [0]>} : vector<2x8x8xbf16>, vector<2x8x8xbf16>, vector<2x8x8xf32> -> vector<2x8x8xf32>
    "tpu.trace_stop"() : () -> ()
    %cst_15 = arith.constant dense<0xFF800000> : vector<2x8xf32>
    %52 = vector.multi_reduction <maximumf>, %51, %cst_15 [2] : vector<2x8x8xf32> to vector<2x8xf32>
    %53 = vector.shape_cast %52 : vector<2x8xf32> to vector<2x8x1xf32>
    %54 = vector.broadcast %53 : vector<2x8x1xf32> to vector<2x8x8xf32>
    %55 = arith.subf %51, %54 : vector<2x8x8xf32>
    %56 = math.exp %55 : vector<2x8x8xf32>
    %cst_16 = arith.constant dense<0.000000e+00> : vector<2x8xf32>
    %57 = vector.multi_reduction <add>, %56, %cst_16 [2] : vector<2x8x8xf32> to vector<2x8xf32>
    %58 = vector.shape_cast %57 : vector<2x8xf32> to vector<2x8x1xf32>
    %59 = arith.truncf %56 : vector<2x8x8xf32> to vector<2x8x8xbf16>
    "tpu.trace_start"() <{level = 10 : i32, message = "bqk,bkd->bqd"}> : () -> ()
    %cst_17 = arith.constant dense<0.000000e+00> : vector<2x8x8xf32>
    %60 = tpu.matmul %59, %50, %cst_17 {dimension_numbers = #tpu.dot_dimension_numbers<[2], [1], [1], [2], [0, 0, 0, 1, 1, 2], [0], [0]>} : vector<2x8x8xbf16>, vector<2x8x8xbf16>, vector<2x8x8xf32> -> vector<2x8x8xf32>
    "tpu.trace_stop"() : () -> ()
    %61 = vector.broadcast %58 : vector<2x8x1xf32> to vector<2x8x8xf32>
    %62 = arith.divf %60, %61 : vector<2x8x8xf32>
    %63 = vector.extract_strided_slice %8 {offsets = [0, 24], sizes = [16, 8], strides = [1, 1]} : vector<16x96xbf16> to vector<16x8xbf16>
    %64 = vector.shape_cast %63 : vector<16x8xbf16> to vector<2x8x8xbf16>
    %65 = vector.extract_strided_slice %8 {offsets = [0, 56], sizes = [16, 8], strides = [1, 1]} : vector<16x96xbf16> to vector<16x8xbf16>
    %66 = vector.shape_cast %65 : vector<16x8xbf16> to vector<2x8x8xbf16>
    %67 = vector.extract_strided_slice %8 {offsets = [0, 88], sizes = [16, 8], strides = [1, 1]} : vector<16x96xbf16> to vector<16x8xbf16>
    %68 = vector.shape_cast %67 : vector<16x8xbf16> to vector<2x8x8xbf16>
    "tpu.trace_start"() <{level = 10 : i32, message = "bqd,bkd->bqk"}> : () -> ()
    %cst_18 = arith.constant dense<0.000000e+00> : vector<2x8x8xf32>
    %69 = tpu.matmul %64, %66, %cst_18 {dimension_numbers = #tpu.dot_dimension_numbers<[2], [2], [1], [1], [0, 0, 0, 1, 1, 1], [0], [0]>} : vector<2x8x8xbf16>, vector<2x8x8xbf16>, vector<2x8x8xf32> -> vector<2x8x8xf32>
    "tpu.trace_stop"() : () -> ()
    %cst_19 = arith.constant dense<0xFF800000> : vector<2x8xf32>
    %70 = vector.multi_reduction <maximumf>, %69, %cst_19 [2] : vector<2x8x8xf32> to vector<2x8xf32>
    %71 = vector.shape_cast %70 : vector<2x8xf32> to vector<2x8x1xf32>
    %72 = vector.broadcast %71 : vector<2x8x1xf32> to vector<2x8x8xf32>
    %73 = arith.subf %69, %72 : vector<2x8x8xf32>
    %74 = math.exp %73 : vector<2x8x8xf32>
    %cst_20 = arith.constant dense<0.000000e+00> : vector<2x8xf32>
    %75 = vector.multi_reduction <add>, %74, %cst_20 [2] : vector<2x8x8xf32> to vector<2x8xf32>
    %76 = vector.shape_cast %75 : vector<2x8xf32> to vector<2x8x1xf32>
    %77 = arith.truncf %74 : vector<2x8x8xf32> to vector<2x8x8xbf16>
    "tpu.trace_start"() <{level = 10 : i32, message = "bqk,bkd->bqd"}> : () -> ()
    %cst_21 = arith.constant dense<0.000000e+00> : vector<2x8x8xf32>
    %78 = tpu.matmul %77, %68, %cst_21 {dimension_numbers = #tpu.dot_dimension_numbers<[2], [1], [1], [2], [0, 0, 0, 1, 1, 2], [0], [0]>} : vector<2x8x8xbf16>, vector<2x8x8xbf16>, vector<2x8x8xf32> -> vector<2x8x8xf32>
    "tpu.trace_stop"() : () -> ()
    %79 = vector.broadcast %76 : vector<2x8x1xf32> to vector<2x8x8xf32>
    %80 = arith.divf %78, %79 : vector<2x8x8xf32>
    %81 = tpu.concatenate %26, %44, %62, %80 in 2 : vector<2x8x8xf32>, vector<2x8x8xf32>, vector<2x8x8xf32>, vector<2x8x8xf32> -> vector<2x8x32xf32>
    %82 = vector.shape_cast %81 : vector<2x8x32xf32> to vector<16x32xf32>
    %83 = arith.truncf %82 : vector<16x32xf32> to vector<16x32xbf16>
    %c0_22 = arith.constant 0 : index
    %c0_23 = arith.constant 0 : index
    %84 = vector.load %arg4[%c0_22, %c0_23] : memref<32x32xbf16, #tpu.memory_space<vmem>>, vector<32x32xbf16>
    %cst_24 = arith.constant dense<0.000000e+00> : vector<16x32xf32>
    %85 = tpu.matmul %83, %84, %cst_24 {dimension_numbers = #tpu.dot_dimension_numbers<[1], [0], [0], [1], [0, 0, 1, 1], [], []>} : vector<16x32xbf16>, vector<32x32xbf16>, vector<16x32xf32> -> vector<16x32xf32>
    %c0_25 = arith.constant 0 : index
    %c0_26 = arith.constant 0 : index
    %86 = vector.load %arg5[%c0_25, %c0_26] : memref<1x32xf32, #tpu.memory_space<vmem>>, vector<1x32xf32>
    %87 = vector.broadcast %86 : vector<1x32xf32> to vector<16x32xf32>
    %88 = arith.addf %85, %87 : vector<16x32xf32>
    %89 = arith.addf %1, %88 : vector<16x32xf32>
    %c0_27 = arith.constant 0 : index
    %c0_28 = arith.constant 0 : index
    %90 = vector.load %arg10[%c0_27, %c0_28] : memref<1x32xf32, #tpu.memory_space<vmem>>, vector<1x32xf32>
    %c0_29 = arith.constant 0 : index
    %c0_30 = arith.constant 0 : index
    %91 = vector.load %arg11[%c0_29, %c0_30] : memref<1x32xf32, #tpu.memory_space<vmem>>, vector<1x32xf32>
    %cst_31 = arith.constant dense<0.000000e+00> : vector<16xf32>
    %92 = vector.multi_reduction <add>, %89, %cst_31 [1] : vector<16x32xf32> to vector<16xf32>
    %93 = vector.shape_cast %92 : vector<16xf32> to vector<16x1xf32>
    %cst_32 = arith.constant 3.200000e+01 : f32
    %94 = vector.broadcast %cst_32 : f32 to vector<16x1xf32>
    %95 = arith.divf %93, %94 : vector<16x1xf32>
    %96 = vector.broadcast %95 : vector<16x1xf32> to vector<16x32xf32>
    %97 = arith.subf %89, %96 : vector<16x32xf32>
    %98 = arith.mulf %97, %97 : vector<16x32xf32>
    %cst_33 = arith.constant dense<0.000000e+00> : vector<16xf32>
    %99 = vector.multi_reduction <add>, %98, %cst_33 [1] : vector<16x32xf32> to vector<16xf32>
    %100 = vector.shape_cast %99 : vector<16xf32> to vector<16x1xf32>
    %cst_34 = arith.constant 3.200000e+01 : f32
    %101 = vector.broadcast %cst_34 : f32 to vector<16x1xf32>
    %102 = arith.divf %100, %101 : vector<16x1xf32>
    %103 = vector.broadcast %95 : vector<16x1xf32> to vector<16x32xf32>
    %104 = arith.subf %89, %103 : vector<16x32xf32>
    %cst_35 = arith.constant 9.99999974E-6 : f32
    %105 = vector.broadcast %cst_35 : f32 to vector<16x1xf32>
    %106 = arith.addf %102, %105 : vector<16x1xf32>
    %107 = math.rsqrt %106 : vector<16x1xf32>
    %108 = vector.broadcast %107 : vector<16x1xf32> to vector<16x32xf32>
    %109 = arith.mulf %104, %108 : vector<16x32xf32>
    %110 = vector.broadcast %90 : vector<1x32xf32> to vector<16x32xf32>
    %111 = arith.mulf %109, %110 : vector<16x32xf32>
    %112 = vector.broadcast %91 : vector<1x32xf32> to vector<16x32xf32>
    %113 = arith.addf %111, %112 : vector<16x32xf32>
    %114 = arith.truncf %113 : vector<16x32xf32> to vector<16x32xbf16>
    %c0_36 = arith.constant 0 : index
    %c0_37 = arith.constant 0 : index
    %115 = vector.load %arg6[%c0_36, %c0_37] : memref<32x64xbf16, #tpu.memory_space<vmem>>, vector<32x64xbf16>
    %cst_38 = arith.constant dense<0.000000e+00> : vector<16x64xf32>
    %116 = tpu.matmul %114, %115, %cst_38 {dimension_numbers = #tpu.dot_dimension_numbers<[1], [0], [0], [1], [0, 0, 1, 1], [], []>} : vector<16x32xbf16>, vector<32x64xbf16>, vector<16x64xf32> -> vector<16x64xf32>
    %c0_39 = arith.constant 0 : index
    %c0_40 = arith.constant 0 : index
    %117 = vector.load %arg7[%c0_39, %c0_40] : memref<1x64xf32, #tpu.memory_space<vmem>>, vector<1x64xf32>
    %118 = vector.broadcast %117 : vector<1x64xf32> to vector<16x64xf32>
    %119 = arith.addf %116, %118 : vector<16x64xf32>
    %cst_41 = arith.constant 0.000000e+00 : f32
    %120 = vector.broadcast %cst_41 : f32 to vector<16x64xf32>
    %121 = arith.maximumf %119, %120 : vector<16x64xf32>
    %122 = arith.truncf %121 : vector<16x64xf32> to vector<16x64xbf16>
    %c0_42 = arith.constant 0 : index
    %c0_43 = arith.constant 0 : index
    %123 = vector.load %arg8[%c0_42, %c0_43] : memref<64x32xbf16, #tpu.memory_space<vmem>>, vector<64x32xbf16>
    %cst_44 = arith.constant dense<0.000000e+00> : vector<16x32xf32>
    %124 = tpu.matmul %122, %123, %cst_44 {dimension_numbers = #tpu.dot_dimension_numbers<[1], [0], [0], [1], [0, 0, 1, 1], [], []>} : vector<16x64xbf16>, vector<64x32xbf16>, vector<16x32xf32> -> vector<16x32xf32>
    %c0_45 = arith.constant 0 : index
    %c0_46 = arith.constant 0 : index
    %125 = vector.load %arg9[%c0_45, %c0_46] : memref<1x32xf32, #tpu.memory_space<vmem>>, vector<1x32xf32>
    %126 = vector.broadcast %125 : vector<1x32xf32> to vector<16x32xf32>
    %127 = arith.addf %124, %126 : vector<16x32xf32>
    %128 = arith.addf %113, %127 : vector<16x32xf32>
    %c0_47 = arith.constant 0 : index
    %c0_48 = arith.constant 0 : index
    %129 = vector.load %arg12[%c0_47, %c0_48] : memref<1x32xf32, #tpu.memory_space<vmem>>, vector<1x32xf32>
    %c0_49 = arith.constant 0 : index
    %c0_50 = arith.constant 0 : index
    %130 = vector.load %arg13[%c0_49, %c0_50] : memref<1x32xf32, #tpu.memory_space<vmem>>, vector<1x32xf32>
    %cst_51 = arith.constant dense<0.000000e+00> : vector<16xf32>
    %131 = vector.multi_reduction <add>, %128, %cst_51 [1] : vector<16x32xf32> to vector<16xf32>
    %132 = vector.shape_cast %131 : vector<16xf32> to vector<16x1xf32>
    %cst_52 = arith.constant 3.200000e+01 : f32
    %133 = vector.broadcast %cst_52 : f32 to vector<16x1xf32>
    %134 = arith.divf %132, %133 : vector<16x1xf32>
    %135 = vector.broadcast %134 : vector<16x1xf32> to vector<16x32xf32>
    %136 = arith.subf %128, %135 : vector<16x32xf32>
    %137 = arith.mulf %136, %136 : vector<16x32xf32>
    %cst_53 = arith.constant dense<0.000000e+00> : vector<16xf32>
    %138 = vector.multi_reduction <add>, %137, %cst_53 [1] : vector<16x32xf32> to vector<16xf32>
    %139 = vector.shape_cast %138 : vector<16xf32> to vector<16x1xf32>
    %cst_54 = arith.constant 3.200000e+01 : f32
    %140 = vector.broadcast %cst_54 : f32 to vector<16x1xf32>
    %141 = arith.divf %139, %140 : vector<16x1xf32>
    %142 = vector.broadcast %134 : vector<16x1xf32> to vector<16x32xf32>
    %143 = arith.subf %128, %142 : vector<16x32xf32>
    %cst_55 = arith.constant 9.99999974E-6 : f32
    %144 = vector.broadcast %cst_55 : f32 to vector<16x1xf32>
    %145 = arith.addf %141, %144 : vector<16x1xf32>
    %146 = math.rsqrt %145 : vector<16x1xf32>
    %147 = vector.broadcast %146 : vector<16x1xf32> to vector<16x32xf32>
    %148 = arith.mulf %143, %147 : vector<16x32xf32>
    %149 = vector.broadcast %129 : vector<1x32xf32> to vector<16x32xf32>
    %150 = arith.mulf %148, %149 : vector<16x32xf32>
    %151 = vector.broadcast %130 : vector<1x32xf32> to vector<16x32xf32>
    %152 = arith.addf %150, %151 : vector<16x32xf32>
    %153 = vector.shape_cast %152 : vector<16x32xf32> to vector<2x8x32xf32>
    %c0_56 = arith.constant 0 : index
    %c0_57 = arith.constant 0 : index
    %c0_58 = arith.constant 0 : index
    %154 = vector.load %arg14[%c0_56, %c0_57, %c0_58] : memref<2x8x32xf32, #tpu.memory_space<vmem>>, vector<2x8x32xf32>
    tpu.vector_store %arg14[%c0_56, %c0_57, %c0_58], %153 {strides = array<i32>} : memref<2x8x32xf32, #tpu.memory_space<vmem>>, vector<2x8x32xf32>,
    return
  }
  func.func @transform_0(%arg0: i32) -> (i32, i32, i32) {
    %c0_i32 = arith.constant 0 : i32
    %c0_i32_0 = arith.constant 0 : i32
    %c0_i32_1 = arith.constant 0 : i32
    return %arg0, %c0_i32, %c0_i32_0 : i32, i32, i32
  }
  func.func @transform_1(%arg0: i32) -> (i32, i32) {
    %c0_i32 = arith.constant 0 : i32
    %c0_i32_0 = arith.constant 0 : i32
    %c0_i32_1 = arith.constant 0 : i32
    return %c0_i32, %c0_i32_0 : i32, i32
  }
  func.func @transform_2(%arg0: i32) -> (i32, i32) {
    %c0_i32 = arith.constant 0 : i32
    %c0_i32_0 = arith.constant 0 : i32
    %c0_i32_1 = arith.constant 0 : i32
    return %c0_i32, %c0_i32_0 : i32, i32
  }
  func.func @transform_3(%arg0: i32) -> (i32, i32) {
    %c0_i32 = arith.constant 0 : i32
    %c0_i32_0 = arith.constant 0 : i32
    %c0_i32_1 = arith.constant 0 : i32
    return %c0_i32, %c0_i32_0 : i32, i32
  }
  func.func @transform_4(%arg0: i32) -> (i32, i32) {
    %c0_i32 = arith.constant 0 : i32
    %c0_i32_0 = arith.constant 0 : i32
    %c0_i32_1 = arith.constant 0 : i32
    return %c0_i32, %c0_i32_0 : i32, i32
  }
  func.func @transform_5(%arg0: i32) -> (i32, i32) {
    %c0_i32 = arith.constant 0 : i32
    %c0_i32_0 = arith.constant 0 : i32
    %c0_i32_1 = arith.constant 0 : i32
    return %c0_i32, %c0_i32_0 : i32, i32
  }
  func.func @transform_6(%arg0: i32) -> (i32, i32) {
    %c0_i32 = arith.constant 0 : i32
    %c0_i32_0 = arith.constant 0 : i32
    %c0_i32_1 = arith.constant 0 : i32
    return %c0_i32, %c0_i32_0 : i32, i32
  }
  func.func @transform_7(%arg0: i32) -> (i32, i32) {
    %c0_i32 = arith.constant 0 : i32
    %c0_i32_0 = arith.constant 0 : i32
    %c0_i32_1 = arith.constant 0 : i32
    return %c0_i32, %c0_i32_0 : i32, i32
  }
  func.func @transform_8(%arg0: i32) -> (i32, i32) {
    %c0_i32 = arith.constant 0 : i32
    %c0_i32_0 = arith.constant 0 : i32
    %c0_i32_1 = arith.constant 0 : i32
    return %c0_i32, %c0_i32_0 : i32, i32
  }
  func.func @transform_9(%arg0: i32) -> (i32, i32) {
    %c0_i32 = arith.constant 0 : i32
    %c0_i32_0 = arith.constant 0 : i32
    %c0_i32_1 = arith.constant 0 : i32
    return %c0_i32, %c0_i32_0 : i32, i32
  }
  func.func @transform_10(%arg0: i32) -> (i32, i32) {
    %c0_i32 = arith.constant 0 : i32
    %c0_i32_0 = arith.constant 0 : i32
    %c0_i32_1 = arith.constant 0 : i32
    return %c0_i32, %c0_i32_0 : i32, i32
  }
  func.func @transform_11(%arg0: i32) -> (i32, i32) {
    %c0_i32 = arith.constant 0 : i32
    %c0_i32_0 = arith.constant 0 : i32
    %c0_i32_1 = arith.constant 0 : i32
    return %c0_i32, %c0_i32_0 : i32, i32
  }
  func.func @transform_12(%arg0: i32) -> (i32, i32) {
    %c0_i32 = arith.constant 0 : i32
    %c0_i32_0 = arith.constant 0 : i32
    %c0_i32_1 = arith.constant 0 : i32
    return %c0_i32, %c0_i32_0 : i32, i32
  }
  func.func @transform_13(%arg0: i32) -> (i32, i32, i32) {
    %c0_i32 = arith.constant 0 : i32
    %c0_i32_0 = arith.constant 0 : i32
    %c0_i32_1 = arith.constant 0 : i32
    return %arg0, %c0_i32, %c0_i32_0 : i32, i32, i32
  }
}

</mosaic_0001>

<llo_original>
// kernel: tpu_custom_call.1
$region0: #{tpu_custom_call.1}
  #allocation0 [shape = 'u32[]', space=smem, size = 0x4, offset = 0x4, fixed_abs, tag = 'smem constant byte address 0x4 - core index']
  #allocation1 [shape = 'u32[72,128]{1,0:T(1,128)}', space=vmem, size = 0x9000, scoped, tag = 'internal scratch']
  %s0 = inlined_call_operand.vmem [shape: f32[2,8,32], index: 0, kind: input, shape index: {}]
  %s1 = inlined_call_operand.vmem [shape: bf16[32,96], index: 1, kind: input, shape index: {}]
  %s2 = inlined_call_operand.vmem [shape: f32[1,96], index: 2, kind: input, shape index: {}]
  %s3 = inlined_call_operand.vmem [shape: bf16[32,32], index: 3, kind: input, shape index: {}]
  %s4 = inlined_call_operand.vmem [shape: f32[1,32], index: 4, kind: input, shape index: {}]
  %s5 = inlined_call_operand.hbm [shape: bf16[32,64], index: 5, kind: input, shape index: {}]
  %s6 = inlined_call_operand.vmem [shape: f32[1,64], index: 6, kind: input, shape index: {}]
  %s7 = inlined_call_operand.vmem [shape: bf16[64,32], index: 7, kind: input, shape index: {}]
  %s8 = inlined_call_operand.vmem [shape: f32[1,32], index: 8, kind: input, shape index: {}]
  %s9 = inlined_call_operand.vmem [shape: f32[1,32], index: 9, kind: input, shape index: {}]
  %s10 = inlined_call_operand.vmem [shape: f32[1,32], index: 10, kind: input, shape index: {}]
  %s11 = inlined_call_operand.vmem [shape: f32[1,32], index: 11, kind: input, shape index: {}]
  %s12 = inlined_call_operand.vmem [shape: f32[1,32], index: 12, kind: input, shape index: {}]
  %s13 = inlined_call_operand.hbm [shape: f32[2,8,32], index: 13, kind: output, shape index: {}]
  %s14 = sld [smem:[#allocation0]]
  $region66: #{tpu_custom_call.1} parent=0
    _
  %s16 = ssub.s32 1, %s14
  %s17 = scalar_select 0, %s16, %s14
  $region1: #{tpu_custom_call.1} parent=0
    #allocation2 [shape = 'u8[8192]{0}', space=vmem, size = 0x2000, scoped, tag = 'input window, operand 5, single buffered']
    #allocation3 [shape = 's32[1]{0}', space=sflag, size = 0x4, scoped, tag = 'scoped memory for tpu_custom_call.1']
    #allocation4 [shape = 's32[1]{0}', space=sflag, size = 0x4, scoped, tag = 'scoped memory for tpu_custom_call.1']
    #allocation5 [shape = 'u8[8192]{0}', space=vmem, size = 0x2000, scoped, tag = 'output window, operand 0, single buffered']
    %18 = vsyncpa [#allocation3], 0
    %19 = vsyncpa [#allocation4], 0
    // Predicated region
    $region2: #{tpu_custom_call.1} parent=1 // pred_check
      _
    $region3: #{tpu_custom_call.1} parent=1 // pred_check_branch
      %21 = sbr.rel (0) target = $region5
    $region4: #{tpu_custom_call.1} parent=1 // pred_region
      _
    $region5: #{tpu_custom_call.1} parent=1 // pred_fallthru
      _
    // Predicated region
    $region6: #{tpu_custom_call.1} parent=1 // pred_check
      _
    $region7: #{tpu_custom_call.1} parent=1 // pred_check_branch
      %23 = sbr.rel (0) target = $region9
    $region8: #{tpu_custom_call.1} parent=1 // pred_region
      _
    $region9: #{tpu_custom_call.1} parent=1 // pred_fallthru
      _
    // Predicated region
    $region10: #{tpu_custom_call.1} parent=1 // pred_check
      _
    $region11: #{tpu_custom_call.1} parent=1 // pred_check_branch
      %25 = sbr.rel (0) target = $region13
    $region12: #{tpu_custom_call.1} parent=1 // pred_region
      _
    $region13: #{tpu_custom_call.1} parent=1 // pred_fallthru
      _
    // Predicated region
    $region14: #{tpu_custom_call.1} parent=1 // pred_check
      _
    $region15: #{tpu_custom_call.1} parent=1 // pred_check_branch
      %27 = sbr.rel (0) target = $region17
    $region16: #{tpu_custom_call.1} parent=1 // pred_region
      _
    $region17: #{tpu_custom_call.1} parent=1 // pred_fallthru
      _
    // Predicated region
    $region18: #{tpu_custom_call.1} parent=1 // pred_check
      _
    $region19: #{tpu_custom_call.1} parent=1 // pred_check_branch
      %29 = sbr.rel (0) target = $region21
    $region20: #{tpu_custom_call.1} parent=1 // pred_region
      _
    $region21: #{tpu_custom_call.1} parent=1 // pred_fallthru
      _
    // Predicated region
    $region22: #{tpu_custom_call.1} parent=1 // pred_check
      _
    $region23: #{tpu_custom_call.1} parent=1 // pred_check_branch
      %31 = sbr.rel (0) target = $region25
    $region24: #{tpu_custom_call.1} parent=1 // pred_region
      %33 = vsyncadd [#allocation3], 0
      %s34 = sshll.u32 %s5, 4
      %s35 = int_to_ptr.hbm [resolvable:$true] %s34
      %s36 = sshll.u32 [#allocation2], 4
      %s37 = int_to_ptr.vmem [resolvable:$true] %s36
      %42 = dma.hbm_to_vmem [thread:$0]  %s35, 256, %s37, [#allocation3], 64, 64, 4
    $region25: #{tpu_custom_call.1} parent=1 // pred_fallthru
      _
    // Predicated region
    $region26: #{tpu_custom_call.1} parent=1 // pred_check
      _
    $region27: #{tpu_custom_call.1} parent=1 // pred_check_branch
      %44 = sbr.rel (0) target = $region29
    $region28: #{tpu_custom_call.1} parent=1 // pred_region
      _
    $region29: #{tpu_custom_call.1} parent=1 // pred_fallthru
      _
    // Predicated region
    $region30: #{tpu_custom_call.1} parent=1 // pred_check
      _
    $region31: #{tpu_custom_call.1} parent=1 // pred_check_branch
      %46 = sbr.rel (0) target = $region33
    $region32: #{tpu_custom_call.1} parent=1 // pred_region
      _
    $region33: #{tpu_custom_call.1} parent=1 // pred_fallthru
      _
    // Predicated region
    $region34: #{tpu_custom_call.1} parent=1 // pred_check
      _
    $region35: #{tpu_custom_call.1} parent=1 // pred_check_branch
      %48 = sbr.rel (0) target = $region37
    $region36: #{tpu_custom_call.1} parent=1 // pred_region
      _
    $region37: #{tpu_custom_call.1} parent=1 // pred_fallthru
      _
    // Predicated region
    $region38: #{tpu_custom_call.1} parent=1 // pred_check
      _
    $region39: #{tpu_custom_call.1} parent=1 // pred_check_branch
      %50 = sbr.rel (0) target = $region41
    $region40: #{tpu_custom_call.1} parent=1 // pred_region
      _
    $region41: #{tpu_custom_call.1} parent=1 // pred_fallthru
      _
    // Predicated region
    $region42: #{tpu_custom_call.1} parent=1 // pred_check
      _
    $region43: #{tpu_custom_call.1} parent=1 // pred_check_branch
      %52 = sbr.rel (0) target = $region45
    $region44: #{tpu_custom_call.1} parent=1 // pred_region
      _
    $region45: #{tpu_custom_call.1} parent=1 // pred_fallthru
      _
    // Predicated region
    $region46: #{tpu_custom_call.1} parent=1 // pred_check
      _
    $region47: #{tpu_custom_call.1} parent=1 // pred_check_branch
      %54 = sbr.rel (0) target = $region49
    $region48: #{tpu_custom_call.1} parent=1 // pred_region
      _
    $region49: #{tpu_custom_call.1} parent=1 // pred_fallthru
      _
    // Predicated region
    $region50: #{tpu_custom_call.1} parent=1 // pred_check
      _
    $region51: #{tpu_custom_call.1} parent=1 // pred_check_branch
      %56 = sbr.rel (0) target = $region53
    $region52: #{tpu_custom_call.1} parent=1 // pred_region
      _
    $region53: #{tpu_custom_call.1} parent=1 // pred_fallthru
      _
    // Predicated region
    $region54: #{tpu_custom_call.1} parent=1 // pred_check
      _
    $region55: #{tpu_custom_call.1} parent=1 // pred_check_branch
      %58 = sbr.rel (0) target = $region57
    $region56: #{tpu_custom_call.1} parent=1 // pred_region
      %60 = dma.done [#allocation3], 256
    $region57: #{tpu_custom_call.1} parent=1 // pred_fallthru
      _
    %v62 = vld [vmem:[%s0] sm:$0xff]
    %v63 = vld [vmem:[%s0 + $0x8] sm:$0xff]
    %v64 = vpack.c.bf16 %v63, %v62
    %v65 = vld [vmem:[%s1] sm:$0xf]
    %v66 = vld [vmem:[%s1 + $0x4] sm:$0xf]
    %v67 = vld [vmem:[%s1 + $0x8] sm:$0xf]
    %v68 = vld [vmem:[%s1 + $0xc] sm:$0xf]
    %v69 = vld [vmem:[%s2] sm:$0x1]
    %v71 = vperm.slane %v69, 0
    %v77 = vunpack.c.l.b16 %v65
    %v78 = vunpack.c.l.b16 %v66
    %v79 = vunpack.c.l.b16 %v67
    %v80 = vunpack.c.l.b16 %v68
    %v81 = vpack.c.b16 %v78, %v77
    %v82 = vpack.c.b16 %v80, %v79
    %vm85 = vcmask 261120
    %v87 = vsel %vm85, %v64, 0
    %89 = vmatpush.bf16.msra.mxu0 0
    %90 = vmatpush.bf16.msra.mxu0 0
    %91 = vmatpush.bf16.msra.mxu0 0
    %92 = vmatpush.bf16.msra.mxu0 0
    %93 = vmatpush.bf16.msra.mxu0 0
    %94 = vmatpush.bf16.msra.mxu0 0
    %95 = vmatpush.bf16.msra.mxu0 %v82
    %96 = vmatpush.bf16.msra.mxu0 %v81
    %97 = vmatmul.bf16.gmra.mxu0 %v87
    %v98 = vpop.f32.mrf.mxu0
    %v99 = vadd.f32 %v71, %v98
    %v100 = vpop.f32.mrf.mxu0
    %v101 = vadd.f32 %v71, %v100
    %102 = vdwg.mxu0
    %v103 = vpack.c.bf16 %v99, %v99
    %v104 = vpack.c.bf16 %v101, %v101
    %v106 = vunpack.c.l.b16 %v103
    %v107 = vpack.c.b16 %v106, %v106
    %108 = vrot.lane.b32.xlu0 %v107, 96
    %v109 = vpop.permute.xlu0 %108
    %vm110 = vcmask 64512
    %v112 = vsel %vm110, %v103, 0
    %v115 = vsel %vm110, %v109, 0
    %117 = vmatpush.bf16.xpose.msra.mxu0 0
    %118 = vmatpush.bf16.xpose.msra.mxu0 0
    %119 = vmatpush.bf16.xpose.msra.mxu0 0
    %120 = vmatpush.bf16.xpose.msra.mxu0 0
    %121 = vmatpush.bf16.xpose.msra.mxu0 0
    %122 = vmatpush.bf16.xpose.msra.mxu0 0
    %123 = vmatpush.bf16.xpose.msra.mxu0 0
    %124 = vmatpush.bf16.xpose.msra.mxu0 %v115
    %125 = vmatmul.bf16.gmra.mxu0 %v112
    %v126 = vpop.f32.mrf.mxu0
    %v127 = vadd.f32 0.0, %v126
    %v128 = vpop.f32.mrf.mxu0
    %129 = vdwg.mxu0
    %v131 = vunpack.c.l.b16 %v104
    %v132 = vpack.c.b16 %v131, %v131
    %133 = vrot.lane.b32.xlu0 %v132, 96
    %v134 = vpop.permute.xlu0 %133
    %v136 = vsel %vm110, %v104, 0
    %v139 = vsel %vm110, %v134, 0
    %141 = vmatpush.bf16.xpose.msra.mxu0 0
    %142 = vmatpush.bf16.xpose.msra.mxu0 0
    %143 = vmatpush.bf16.xpose.msra.mxu0 0
    %144 = vmatpush.bf16.xpose.msra.mxu0 0
    %145 = vmatpush.bf16.xpose.msra.mxu0 0
    %146 = vmatpush.bf16.xpose.msra.mxu0 0
    %147 = vmatpush.bf16.xpose.msra.mxu0 0
    %148 = vmatpush.bf16.xpose.msra.mxu0 %v139
    %149 = vmatmul.bf16.gmra.mxu0 %v136
    %v150 = vpop.f32.mrf.mxu0
    %v151 = vadd.f32 0.0, %v150
    %v152 = vpop.f32.mrf.mxu0
    %153 = vdwg.mxu0
    %v154 = vsel %vm110, %v127, -inf
    %155 = vmax.xlane.f32.xlu0 %v154
    %v156 = vpop.xlane.xlu0 %155
    %v157 = vsel %vm110, %v151, -inf
    %158 = vmax.xlane.f32.xlu0 %v157
    %v159 = vpop.xlane.xlu0 %158
    %v160 = vsub.f32 %v127, %v156
    %v161 = vsub.f32 %v151, %v159
    %v162 = vmul.f32 %v160, 1.442695
    %v163 = vpow.pop %v162
    %v164 = vmul.f32 %v161, 1.442695
    %v165 = vpow.pop %v164
    %v166 = vsel %vm110, %v163, 0.0
    %167 = vadd.xlane.f32.xlu0 %v166
    %v168 = vpop.xlane.xlu0 %167
    %v169 = vsel %vm110, %v165, 0.0
    %170 = vadd.xlane.f32.xlu0 %v169
    %v171 = vpop.xlane.xlu0 %170
    %v172 = vpack.c.bf16 %v163, %v163
    %v173 = vpack.c.bf16 %v165, %v165
    %174 = vrot.lane.b32.xlu0 %v107, 64
    %v175 = vpop.permute.xlu0 %174
    %v177 = vsel %vm110, %v172, 0
    %vm179 = vcmask 1043456
    %v181 = vsel %vm179, %v175, 0
    %183 = vmatpush.bf16.msra.mxu0 0
    %184 = vmatpush.bf16.msra.mxu0 0
    %185 = vmatpush.bf16.msra.mxu0 0
    %186 = vmatpush.bf16.msra.mxu0 0
    %187 = vmatpush.bf16.msra.mxu0 0
    %188 = vmatpush.bf16.msra.mxu0 0
    %189 = vmatpush.bf16.msra.mxu0 0
    %190 = vmatpush.bf16.msra.mxu0 %v181
    %191 = vmatmul.bf16.gmra.mxu0 %v177
    %v192 = vpop.f32.mrf.mxu0
    %v193 = vadd.f32 0.0, %v192
    %v194 = vpop.f32.mrf.mxu0
    %195 = vdwg.mxu0
    %196 = vrot.lane.b32.xlu0 %v132, 64
    %v197 = vpop.permute.xlu0 %196
    %v199 = vsel %vm110, %v173, 0
    %v202 = vsel %vm179, %v197, 0
    %204 = vmatpush.bf16.msra.mxu0 0
    %205 = vmatpush.bf16.msra.mxu0 0
    %206 = vmatpush.bf16.msra.mxu0 0
    %207 = vmatpush.bf16.msra.mxu0 0
    %208 = vmatpush.bf16.msra.mxu0 0
    %209 = vmatpush.bf16.msra.mxu0 0
    %210 = vmatpush.bf16.msra.mxu0 0
    %211 = vmatpush.bf16.msra.mxu0 %v202
    %212 = vmatmul.bf16.gmra.mxu0 %v199
    %v213 = vpop.f32.mrf.mxu0
    %v214 = vadd.f32 0.0, %v213
    %v215 = vpop.f32.mrf.mxu0
    %216 = vdwg.mxu0
    %v217 = vrcp.pop %v168
    %v218 = vmul.f32 %v168, %v217
    %v219 = vsub.f32 1.0, %v218
    %v220 = vmul.f32 %v217, %v219
    %v221 = vadd.f32 %v217, %v220
    %vm222 = vweird.f32 %v168
    %vm223 = vweird.f32 %v217
    %vm224 = vmor %vm222, %vm223
    %v225 = vsel %vm224, %v217, %v221
    %v226 = vand.u32 2147483647, %v168
    %vm227 = vcmp.eq.f32.partialorder %v226, 8.507059e+37
    %v228 = vand.u32 %v168, 2147483648
    %v229 = vor.u32 1.1754944e-38, %v228
    %v230 = vsel %vm227, %v229, %v225
    %v231 = vmul.f32 %v193, %v230
    %v232 = vrcp.pop %v171
    %v233 = vmul.f32 %v171, %v232
    %v234 = vsub.f32 1.0, %v233
    %v235 = vmul.f32 %v232, %v234
    %v236 = vadd.f32 %v232, %v235
    %vm237 = vweird.f32 %v171
    %vm238 = vweird.f32 %v232
    %vm239 = vmor %vm237, %vm238
    %v240 = vsel %vm239, %v232, %v236
    %v241 = vand.u32 2147483647, %v171
    %vm242 = vcmp.eq.f32.partialorder %v241, 8.507059e+37
    %v243 = vand.u32 %v171, 2147483648
    %v244 = vor.u32 1.1754944e-38, %v243
    %v245 = vsel %vm242, %v244, %v240
    %v246 = vmul.f32 %v214, %v245
    %247 = vrot.lane.b32.xlu0 %v107, 120
    %v248 = vpop.permute.xlu0 %247
    %249 = vrot.lane.b32.xlu0 %v107, 88
    %v250 = vpop.permute.xlu0 %249
    %v252 = vsel %vm110, %v248, 0
    %v255 = vsel %vm110, %v250, 0
    %257 = vmatpush.bf16.xpose.msra.mxu0 0
    %258 = vmatpush.bf16.xpose.msra.mxu0 0
    %259 = vmatpush.bf16.xpose.msra.mxu0 0
    %260 = vmatpush.bf16.xpose.msra.mxu0 0
    %261 = vmatpush.bf16.xpose.msra.mxu0 0
    %262 = vmatpush.bf16.xpose.msra.mxu0 0
    %263 = vmatpush.bf16.xpose.msra.mxu0 0
    %264 = vmatpush.bf16.xpose.msra.mxu0 %v255
    %265 = vmatmul.bf16.gmra.mxu0 %v252
    %v266 = vpop.f32.mrf.mxu0
    %v267 = vadd.f32 0.0, %v266
    %v268 = vpop.f32.mrf.mxu0
    %269 = vdwg.mxu0
    %270 = vrot.lane.b32.xlu0 %v132, 120
    %v271 = vpop.permute.xlu0 %270
    %272 = vrot.lane.b32.xlu0 %v132, 88
    %v273 = vpop.permute.xlu0 %272
    %v275 = vsel %vm110, %v271, 0
    %v278 = vsel %vm110, %v273, 0
    %280 = vmatpush.bf16.xpose.msra.mxu0 0
    %281 = vmatpush.bf16.xpose.msra.mxu0 0
    %282 = vmatpush.bf16.xpose.msra.mxu0 0
    %283 = vmatpush.bf16.xpose.msra.mxu0 0
    %284 = vmatpush.bf16.xpose.msra.mxu0 0
    %285 = vmatpush.bf16.xpose.msra.mxu0 0
    %286 = vmatpush.bf16.xpose.msra.mxu0 0
    %287 = vmatpush.bf16.xpose.msra.mxu0 %v278
    %288 = vmatmul.bf16.gmra.mxu0 %v275
    %v289 = vpop.f32.mrf.mxu0
    %v290 = vadd.f32 0.0, %v289
    %v291 = vpop.f32.mrf.mxu0
    %292 = vdwg.mxu0
    %v293 = vsel %vm110, %v267, -inf
    %294 = vmax.xlane.f32.xlu0 %v293
    %v295 = vpop.xlane.xlu0 %294
    %v296 = vsel %vm110, %v290, -inf
    %297 = vmax.xlane.f32.xlu0 %v296
    %v298 = vpop.xlane.xlu0 %297
    %v299 = vsub.f32 %v267, %v295
    %v300 = vsub.f32 %v290, %v298
    %v301 = vmul.f32 %v299, 1.442695
    %v302 = vpow.pop %v301
    %v303 = vmul.f32 %v300, 1.442695
    %v304 = vpow.pop %v303
    %v305 = vsel %vm110, %v302, 0.0
    %306 = vadd.xlane.f32.xlu0 %v305
    %v307 = vpop.xlane.xlu0 %306
    %v308 = vsel %vm110, %v304, 0.0
    %309 = vadd.xlane.f32.xlu0 %v308
    %v310 = vpop.xlane.xlu0 %309
    %v311 = vpack.c.bf16 %v302, %v302
    %v312 = vpack.c.bf16 %v304, %v304
    %313 = vrot.lane.b32.xlu0 %v107, 56
    %v314 = vpop.permute.xlu0 %313
    %v316 = vsel %vm110, %v311, 0
    %v319 = vsel %vm179, %v314, 0
    %321 = vmatpush.bf16.msra.mxu0 0
    %322 = vmatpush.bf16.msra.mxu0 0
    %323 = vmatpush.bf16.msra.mxu0 0
    %324 = vmatpush.bf16.msra.mxu0 0
    %325 = vmatpush.bf16.msra.mxu0 0
    %326 = vmatpush.bf16.msra.mxu0 0
    %327 = vmatpush.bf16.msra.mxu0 0
    %328 = vmatpush.bf16.msra.mxu0 %v319
    %329 = vmatmul.bf16.gmra.mxu0 %v316
    %v330 = vpop.f32.mrf.mxu0
    %v331 = vadd.f32 0.0, %v330
    %v332 = vpop.f32.mrf.mxu0
    %333 = vdwg.mxu0
    %334 = vrot.lane.b32.xlu0 %v132, 56
    %v335 = vpop.permute.xlu0 %334
    %v337 = vsel %vm110, %v312, 0
    %v340 = vsel %vm179, %v335, 0
    %342 = vmatpush.bf16.msra.mxu0 0
    %343 = vmatpush.bf16.msra.mxu0 0
    %344 = vmatpush.bf16.msra.mxu0 0
    %345 = vmatpush.bf16.msra.mxu0 0
    %346 = vmatpush.bf16.msra.mxu0 0
    %347 = vmatpush.bf16.msra.mxu0 0
    %348 = vmatpush.bf16.msra.mxu0 0
    %349 = vmatpush.bf16.msra.mxu0 %v340
    %350 = vmatmul.bf16.gmra.mxu0 %v337
    %v351 = vpop.f32.mrf.mxu0
    %v352 = vadd.f32 0.0, %v351
    %v353 = vpop.f32.mrf.mxu0
    %354 = vdwg.mxu0
    %v355 = vrcp.pop %v307
    %v356 = vmul.f32 %v307, %v355
    %v357 = vsub.f32 1.0, %v356
    %v358 = vmul.f32 %v355, %v357
    %v359 = vadd.f32 %v355, %v358
    %vm360 = vweird.f32 %v307
    %vm361 = vweird.f32 %v355
    %vm362 = vmor %vm360, %vm361
    %v363 = vsel %vm362, %v355, %v359
    %v364 = vand.u32 2147483647, %v307
    %vm365 = vcmp.eq.f32.partialorder %v364, 8.507059e+37
    %v366 = vand.u32 %v307, 2147483648
    %v367 = vor.u32 1.1754944e-38, %v366
    %v368 = vsel %vm365, %v367, %v363
    %v369 = vmul.f32 %v331, %v368
    %v370 = vrcp.pop %v310
    %v371 = vmul.f32 %v310, %v370
    %v372 = vsub.f32 1.0, %v371
    %v373 = vmul.f32 %v370, %v372
    %v374 = vadd.f32 %v370, %v373
    %vm375 = vweird.f32 %v310
    %vm376 = vweird.f32 %v370
    %vm377 = vmor %vm375, %vm376
    %v378 = vsel %vm377, %v370, %v374
    %v379 = vand.u32 2147483647, %v310
    %vm380 = vcmp.eq.f32.partialorder %v379, 8.507059e+37
    %v381 = vand.u32 %v310, 2147483648
    %v382 = vor.u32 1.1754944e-38, %v381
    %v383 = vsel %vm380, %v382, %v378
    %v384 = vmul.f32 %v352, %v383
    %385 = vrot.lane.b32.xlu0 %v107, 112
    %v386 = vpop.permute.xlu0 %385
    %387 = vrot.lane.b32.xlu0 %v107, 80
    %v388 = vpop.permute.xlu0 %387
    %v390 = vsel %vm110, %v386, 0
    %v393 = vsel %vm110, %v388, 0
    %395 = vmatpush.bf16.xpose.msra.mxu0 0
    %396 = vmatpush.bf16.xpose.msra.mxu0 0
    %397 = vmatpush.bf16.xpose.msra.mxu0 0
    %398 = vmatpush.bf16.xpose.msra.mxu0 0
    %399 = vmatpush.bf16.xpose.msra.mxu0 0
    %400 = vmatpush.bf16.xpose.msra.mxu0 0
    %401 = vmatpush.bf16.xpose.msra.mxu0 0
    %402 = vmatpush.bf16.xpose.msra.mxu0 %v393
    %403 = vmatmul.bf16.gmra.mxu0 %v390
    %v404 = vpop.f32.mrf.mxu0
    %v405 = vadd.f32 0.0, %v404
    %v406 = vpop.f32.mrf.mxu0
    %407 = vdwg.mxu0
    %408 = vrot.lane.b32.xlu0 %v132, 112
    %v409 = vpop.permute.xlu0 %408
    %410 = vrot.lane.b32.xlu0 %v132, 80
    %v411 = vpop.permute.xlu0 %410
    %v413 = vsel %vm110, %v409, 0
    %v416 = vsel %vm110, %v411, 0
    %418 = vmatpush.bf16.xpose.msra.mxu0 0
    %419 = vmatpush.bf16.xpose.msra.mxu0 0
    %420 = vmatpush.bf16.xpose.msra.mxu0 0
    %421 = vmatpush.bf16.xpose.msra.mxu0 0
    %422 = vmatpush.bf16.xpose.msra.mxu0 0
    %423 = vmatpush.bf16.xpose.msra.mxu0 0
    %424 = vmatpush.bf16.xpose.msra.mxu0 0
    %425 = vmatpush.bf16.xpose.msra.mxu0 %v416
    %426 = vmatmul.bf16.gmra.mxu0 %v413
    %v427 = vpop.f32.mrf.mxu0
    %v428 = vadd.f32 0.0, %v427
    %v429 = vpop.f32.mrf.mxu0
    %430 = vdwg.mxu0
    %v431 = vsel %vm110, %v405, -inf
    %432 = vmax.xlane.f32.xlu0 %v431
    %v433 = vpop.xlane.xlu0 %432
    %v434 = vsel %vm110, %v428, -inf
    %435 = vmax.xlane.f32.xlu0 %v434
    %v436 = vpop.xlane.xlu0 %435
    %v437 = vsub.f32 %v405, %v433
    %v438 = vsub.f32 %v428, %v436
    %v439 = vmul.f32 %v437, 1.442695
    %v440 = vpow.pop %v439
    %v441 = vmul.f32 %v438, 1.442695
    %v442 = vpow.pop %v441
    %v443 = vsel %vm110, %v440, 0.0
    %444 = vadd.xlane.f32.xlu0 %v443
    %v445 = vpop.xlane.xlu0 %444
    %v446 = vsel %vm110, %v442, 0.0
    %447 = vadd.xlane.f32.xlu0 %v446
    %v448 = vpop.xlane.xlu0 %447
    %v449 = vpack.c.bf16 %v440, %v440
    %v450 = vpack.c.bf16 %v442, %v442
    %451 = vrot.lane.b32.xlu0 %v107, 48
    %v452 = vpop.permute.xlu0 %451
    %v454 = vsel %vm110, %v449, 0
    %v457 = vsel %vm179, %v452, 0
    %459 = vmatpush.bf16.msra.mxu0 0
    %460 = vmatpush.bf16.msra.mxu0 0
    %461 = vmatpush.bf16.msra.mxu0 0
    %462 = vmatpush.bf16.msra.mxu0 0
    %463 = vmatpush.bf16.msra.mxu0 0
    %464 = vmatpush.bf16.msra.mxu0 0
    %465 = vmatpush.bf16.msra.mxu0 0
    %466 = vmatpush.bf16.msra.mxu0 %v457
    %467 = vmatmul.bf16.gmra.mxu0 %v454
    %v468 = vpop.f32.mrf.mxu0
    %v469 = vadd.f32 0.0, %v468
    %v470 = vpop.f32.mrf.mxu0
    %471 = vdwg.mxu0
    %472 = vrot.lane.b32.xlu0 %v132, 48
    %v473 = vpop.permute.xlu0 %472
    %v475 = vsel %vm110, %v450, 0
    %v478 = vsel %vm179, %v473, 0
    %480 = vmatpush.bf16.msra.mxu0 0
    %481 = vmatpush.bf16.msra.mxu0 0
    %482 = vmatpush.bf16.msra.mxu0 0
    %483 = vmatpush.bf16.msra.mxu0 0
    %484 = vmatpush.bf16.msra.mxu0 0
    %485 = vmatpush.bf16.msra.mxu0 0
    %486 = vmatpush.bf16.msra.mxu0 0
    %487 = vmatpush.bf16.msra.mxu0 %v478
    %488 = vmatmul.bf16.gmra.mxu0 %v475
    %v489 = vpop.f32.mrf.mxu0
    %v490 = vadd.f32 0.0, %v489
    %v491 = vpop.f32.mrf.mxu0
    %492 = vdwg.mxu0
    %v493 = vrcp.pop %v445
    %v494 = vmul.f32 %v445, %v493
    %v495 = vsub.f32 1.0, %v494
    %v496 = vmul.f32 %v493, %v495
    %v497 = vadd.f32 %v493, %v496
    %vm498 = vweird.f32 %v445
    %vm499 = vweird.f32 %v493
    %vm500 = vmor %vm498, %vm499
    %v501 = vsel %vm500, %v493, %v497
    %v502 = vand.u32 2147483647, %v445
    %vm503 = vcmp.eq.f32.partialorder %v502, 8.507059e+37
    %v504 = vand.u32 %v445, 2147483648
    %v505 = vor.u32 1.1754944e-38, %v504
    %v506 = vsel %vm503, %v505, %v501
    %v507 = vmul.f32 %v469, %v506
    %v508 = vrcp.pop %v448
    %v509 = vmul.f32 %v448, %v508
    %v510 = vsub.f32 1.0, %v509
    %v511 = vmul.f32 %v508, %v510
    %v512 = vadd.f32 %v508, %v511
    %vm513 = vweird.f32 %v448
    %vm514 = vweird.f32 %v508
    %vm515 = vmor %vm513, %vm514
    %v516 = vsel %vm515, %v508, %v512
    %v517 = vand.u32 2147483647, %v448
    %vm518 = vcmp.eq.f32.partialorder %v517, 8.507059e+37
    %v519 = vand.u32 %v448, 2147483648
    %v520 = vor.u32 1.1754944e-38, %v519
    %v521 = vsel %vm518, %v520, %v516
    %v522 = vmul.f32 %v490, %v521
    %523 = vrot.lane.b32.xlu0 %v107, 104
    %v524 = vpop.permute.xlu0 %523
    %525 = vrot.lane.b32.xlu0 %v107, 72
    %v526 = vpop.permute.xlu0 %525
    %v528 = vsel %vm110, %v524, 0
    %v531 = vsel %vm110, %v526, 0
    %533 = vmatpush.bf16.xpose.msra.mxu0 0
    %534 = vmatpush.bf16.xpose.msra.mxu0 0
    %535 = vmatpush.bf16.xpose.msra.mxu0 0
    %536 = vmatpush.bf16.xpose.msra.mxu0 0
    %537 = vmatpush.bf16.xpose.msra.mxu0 0
    %538 = vmatpush.bf16.xpose.msra.mxu0 0
    %539 = vmatpush.bf16.xpose.msra.mxu0 0
    %540 = vmatpush.bf16.xpose.msra.mxu0 %v531
    %541 = vmatmul.bf16.gmra.mxu0 %v528
    %v542 = vpop.f32.mrf.mxu0
    %v543 = vadd.f32 0.0, %v542
    %v544 = vpop.f32.mrf.mxu0
    %545 = vdwg.mxu0
    %546 = vrot.lane.b32.xlu0 %v132, 104
    %v547 = vpop.permute.xlu0 %546
    %548 = vrot.lane.b32.xlu0 %v132, 72
    %v549 = vpop.permute.xlu0 %548
    %v551 = vsel %vm110, %v547, 0
    %v554 = vsel %vm110, %v549, 0
    %556 = vmatpush.bf16.xpose.msra.mxu0 0
    %557 = vmatpush.bf16.xpose.msra.mxu0 0
    %558 = vmatpush.bf16.xpose.msra.mxu0 0
    %559 = vmatpush.bf16.xpose.msra.mxu0 0
    %560 = vmatpush.bf16.xpose.msra.mxu0 0
    %561 = vmatpush.bf16.xpose.msra.mxu0 0
    %562 = vmatpush.bf16.xpose.msra.mxu0 0
    %563 = vmatpush.bf16.xpose.msra.mxu0 %v554
    %564 = vmatmul.bf16.gmra.mxu0 %v551
    %v565 = vpop.f32.mrf.mxu0
    %v566 = vadd.f32 0.0, %v565
    %v567 = vpop.f32.mrf.mxu0
    %568 = vdwg.mxu0
    %v569 = vsel %vm110, %v543, -inf
    %570 = vmax.xlane.f32.xlu0 %v569
    %v571 = vpop.xlane.xlu0 %570
    %v572 = vsel %vm110, %v566, -inf
    %573 = vmax.xlane.f32.xlu0 %v572
    %v574 = vpop.xlane.xlu0 %573
    %v575 = vsub.f32 %v543, %v571
    %v576 = vsub.f32 %v566, %v574
    %v577 = vmul.f32 %v575, 1.442695
    %v578 = vpow.pop %v577
    %v579 = vmul.f32 %v576, 1.442695
    %v580 = vpow.pop %v579
    %v581 = vsel %vm110, %v578, 0.0
    %582 = vadd.xlane.f32.xlu0 %v581
    %v583 = vpop.xlane.xlu0 %582
    %v584 = vsel %vm110, %v580, 0.0
    %585 = vadd.xlane.f32.xlu0 %v584
    %v586 = vpop.xlane.xlu0 %585
    %v587 = vpack.c.bf16 %v578, %v578
    %v588 = vpack.c.bf16 %v580, %v580
    %589 = vrot.lane.b32.xlu0 %v107, 40
    %v590 = vpop.permute.xlu0 %589
    %v592 = vsel %vm110, %v587, 0
    %v595 = vsel %vm179, %v590, 0
    %597 = vmatpush.bf16.msra.mxu0 0
    %598 = vmatpush.bf16.msra.mxu0 0
    %599 = vmatpush.bf16.msra.mxu0 0
    %600 = vmatpush.bf16.msra.mxu0 0
    %601 = vmatpush.bf16.msra.mxu0 0
    %602 = vmatpush.bf16.msra.mxu0 0
    %603 = vmatpush.bf16.msra.mxu0 0
    %604 = vmatpush.bf16.msra.mxu0 %v595
    %605 = vmatmul.bf16.gmra.mxu0 %v592
    %v606 = vpop.f32.mrf.mxu0
    %v607 = vadd.f32 0.0, %v606
    %v608 = vpop.f32.mrf.mxu0
    %609 = vdwg.mxu0
    %610 = vrot.lane.b32.xlu0 %v132, 40
    %v611 = vpop.permute.xlu0 %610
    %v613 = vsel %vm110, %v588, 0
    %v616 = vsel %vm179, %v611, 0
    %618 = vmatpush.bf16.msra.mxu0 0
    %619 = vmatpush.bf16.msra.mxu0 0
    %620 = vmatpush.bf16.msra.mxu0 0
    %621 = vmatpush.bf16.msra.mxu0 0
    %622 = vmatpush.bf16.msra.mxu0 0
    %623 = vmatpush.bf16.msra.mxu0 0
    %624 = vmatpush.bf16.msra.mxu0 0
    %625 = vmatpush.bf16.msra.mxu0 %v616
    %626 = vmatmul.bf16.gmra.mxu0 %v613
    %v627 = vpop.f32.mrf.mxu0
    %v628 = vadd.f32 0.0, %v627
    %v629 = vpop.f32.mrf.mxu0
    %630 = vdwg.mxu0
    %v631 = vrcp.pop %v583
    %v632 = vmul.f32 %v583, %v631
    %v633 = vsub.f32 1.0, %v632
    %v634 = vmul.f32 %v631, %v633
    %v635 = vadd.f32 %v631, %v634
    %vm636 = vweird.f32 %v583
    %vm637 = vweird.f32 %v631
    %vm638 = vmor %vm636, %vm637
    %v639 = vsel %vm638, %v631, %v635
    %v640 = vand.u32 2147483647, %v583
    %vm641 = vcmp.eq.f32.partialorder %v640, 8.507059e+37
    %v642 = vand.u32 %v583, 2147483648
    %v643 = vor.u32 1.1754944e-38, %v642
    %v644 = vsel %vm641, %v643, %v639
    %v645 = vmul.f32 %v607, %v644
    %v646 = vrcp.pop %v586
    %v647 = vmul.f32 %v586, %v646
    %v648 = vsub.f32 1.0, %v647
    %v649 = vmul.f32 %v646, %v648
    %v650 = vadd.f32 %v646, %v649
    %vm651 = vweird.f32 %v586
    %vm652 = vweird.f32 %v646
    %vm653 = vmor %vm651, %vm652
    %v654 = vsel %vm653, %v646, %v650
    %v655 = vand.u32 2147483647, %v586
    %vm656 = vcmp.eq.f32.partialorder %v655, 8.507059e+37
    %v657 = vand.u32 %v586, 2147483648
    %v658 = vor.u32 1.1754944e-38, %v657
    %v659 = vsel %vm656, %v658, %v654
    %v660 = vmul.f32 %v628, %v659
    %663 = vrot.lane.b32.xlu0 %v369, 8
    %v664 = vpop.permute.xlu0 %663
    %665 = vrot.lane.b32.xlu0 %v384, 8
    %v666 = vpop.permute.xlu0 %665
    %671 = vrot.lane.b32.xlu0 %v507, 16
    %v672 = vpop.permute.xlu0 %671
    %673 = vrot.lane.b32.xlu0 %v522, 16
    %v674 = vpop.permute.xlu0 %673
    %679 = vrot.lane.b32.xlu0 %v645, 24
    %v680 = vpop.permute.xlu0 %679
    %681 = vrot.lane.b32.xlu0 %v660, 24
    %v682 = vpop.permute.xlu0 %681
    %v685 = vsel %vm110, %v231, %v664
    %v686 = vsel %vm110, %v246, %v666
    %vm687 = vcmask 130048
    %v688 = vsel %vm687, %v685, %v672
    %v689 = vsel %vm687, %v686, %v674
    %vm690 = vcmask 195584
    %v691 = vsel %vm690, %v688, %v680
    %v692 = vsel %vm690, %v689, %v682
    %v693 = vpack.c.bf16 %v692, %v691
    %v694 = vld [vmem:[%s3] sm:$0xf]
    %v695 = vld [vmem:[%s3 + $0x4] sm:$0xf]
    %v696 = vld [vmem:[%s3 + $0x8] sm:$0xf]
    %v697 = vld [vmem:[%s3 + $0xc] sm:$0xf]
    %v698 = vld [vmem:[%s4] sm:$0x1]
    %v700 = vperm.slane %v698, 0
    %v706 = vunpack.c.l.b16 %v694
    %v707 = vunpack.c.l.b16 %v695
    %v708 = vunpack.c.l.b16 %v696
    %v709 = vunpack.c.l.b16 %v697
    %v710 = vpack.c.b16 %v707, %v706
    %v711 = vpack.c.b16 %v709, %v708
    %v715 = vsel %vm85, %v693, 0
    %717 = vmatpush.bf16.msra.mxu0 0
    %718 = vmatpush.bf16.msra.mxu0 0
    %719 = vmatpush.bf16.msra.mxu0 0
    %720 = vmatpush.bf16.msra.mxu0 0
    %721 = vmatpush.bf16.msra.mxu0 0
    %722 = vmatpush.bf16.msra.mxu0 0
    %723 = vmatpush.bf16.msra.mxu0 %v711
    %724 = vmatpush.bf16.msra.mxu0 %v710
    %725 = vmatmul.bf16.gmra.mxu0 %v715
    %v726 = vpop.f32.mrf.mxu0
    %v727 = vadd.f32 %v700, %v726
    %v728 = vpop.f32.mrf.mxu0
    %v729 = vadd.f32 %v700, %v728
    %730 = vdwg.mxu0
    %v731 = vadd.f32 %v62, %v727
    %v732 = vadd.f32 %v63, %v729
    %v733 = vld [vmem:[%s9] sm:$0x1]
    %v734 = vld [vmem:[%s10] sm:$0x1]
    %v735 = vsel %vm85, %v731, 0.0
    %736 = vadd.xlane.f32.xlu0 %v735
    %v737 = vpop.xlane.xlu0 %736
    %v738 = vsel %vm85, %v732, 0.0
    %739 = vadd.xlane.f32.xlu0 %v738
    %v740 = vpop.xlane.xlu0 %739
    %v741 = vrcp.pop 32.0
    %v742 = vmul.f32 32.0, %v741
    %v743 = vsub.f32 1.0, %v742
    %v744 = vmul.f32 %v741, %v743
    %v745 = vadd.f32 %v741, %v744
    %vm746 = vweird.f32 %v741
    %v747 = vsel %vm746, %v741, %v745
    %v748 = vmul.f32 %v737, %v747
    %v749 = vmul.f32 %v740, %v747
    %v750 = vsub.f32 %v731, %v748
    %v751 = vsub.f32 %v732, %v749
    %v752 = vmul.f32 %v750, %v750
    %v753 = vmul.f32 %v751, %v751
    %v754 = vsel %vm85, %v752, 0.0
    %755 = vadd.xlane.f32.xlu0 %v754
    %v756 = vpop.xlane.xlu0 %755
    %v757 = vsel %vm85, %v753, 0.0
    %758 = vadd.xlane.f32.xlu0 %v757
    %v759 = vpop.xlane.xlu0 %758
    %v760 = vmul.f32 %v756, %v747
    %v761 = vmul.f32 %v759, %v747
    %v762 = vadd.f32 %v760, 1e-05
    %v763 = vadd.f32 %v761, 1e-05
    %v764 = vrsqrt.pop %v762
    %v765 = vmul.f32 %v764, %v762
    %v766 = vmul.f32 %v765, %v764
    %v767 = vmul.f32 0.5, %v766
    %v768 = vsub.f32 1.5, %v767
    %v769 = vmul.f32 %v764, %v768
    %vm770 = vweird.f32 %v762
    %vm771 = vweird.f32 %v764
    %vm772 = vmor %vm770, %vm771
    %v773 = vsel %vm772, %v764, %v769
    %v774 = vrsqrt.pop %v763
    %v775 = vmul.f32 %v774, %v763
    %v776 = vmul.f32 %v775, %v774
    %v777 = vmul.f32 0.5, %v776
    %v778 = vsub.f32 1.5, %v777
    %v779 = vmul.f32 %v774, %v778
    %vm780 = vweird.f32 %v763
    %vm781 = vweird.f32 %v774
    %vm782 = vmor %vm780, %vm781
    %v783 = vsel %vm782, %v774, %v779
    %v784 = vmul.f32 %v750, %v773
    %v785 = vmul.f32 %v751, %v783
    %v787 = vperm.slane %v733, 0
    %v789 = vmul.f32 %v784, %v787
    %v790 = vmul.f32 %v785, %v787
    %v792 = vperm.slane %v734, 0
    %v794 = vadd.f32 %v789, %v792
    %v795 = vadd.f32 %v790, %v792
    %v796 = vpack.c.bf16 %v795, %v794
    %v797 = vld [vmem:[#allocation2] sm:$0xf]
    %v798 = vld [vmem:[#allocation2 + $0x4] sm:$0xf]
    %v799 = vld [vmem:[#allocation2 + $0x8] sm:$0xf]
    %v800 = vld [vmem:[#allocation2 + $0xc] sm:$0xf]
    %v801 = vld [vmem:[%s6] sm:$0x1]
    %v803 = vperm.slane %v801, 0
    %v809 = vunpack.c.l.b16 %v797
    %v810 = vunpack.c.l.b16 %v798
    %v811 = vunpack.c.l.b16 %v799
    %v812 = vunpack.c.l.b16 %v800
    %v813 = vpack.c.b16 %v810, %v809
    %v814 = vpack.c.b16 %v812, %v811
    %v818 = vsel %vm85, %v796, 0
    %820 = vmatpush.bf16.msra.mxu0 0
    %821 = vmatpush.bf16.msra.mxu0 0
    %822 = vmatpush.bf16.msra.mxu0 0
    %823 = vmatpush.bf16.msra.mxu0 0
    %824 = vmatpush.bf16.msra.mxu0 0
    %825 = vmatpush.bf16.msra.mxu0 0
    %826 = vmatpush.bf16.msra.mxu0 %v814
    %827 = vmatpush.bf16.msra.mxu0 %v813
    %828 = vmatmul.bf16.gmra.mxu0 %v818
    %v829 = vpop.f32.mrf.mxu0
    %v830 = vadd.f32 %v803, %v829
    %v831 = vpop.f32.mrf.mxu0
    %v832 = vadd.f32 %v803, %v831
    %833 = vdwg.mxu0
    %v834 = vmax.f32 %v830, 0.0
    %v835 = vmax.f32 %v832, 0.0
    %v836 = vpack.c.bf16 %v835, %v834
    %v837 = vld [vmem:[%s7] sm:$0xf]
    %v838 = vld [vmem:[%s7 + $0x4] sm:$0xf]
    %v839 = vld [vmem:[%s7 + $0x8] sm:$0xf]
    %v840 = vld [vmem:[%s7 + $0xc] sm:$0xf]
    %v841 = vld [vmem:[%s7 + $0x10] sm:$0xf]
    %v842 = vld [vmem:[%s7 + $0x14] sm:$0xf]
    %v843 = vld [vmem:[%s7 + $0x18] sm:$0xf]
    %v844 = vld [vmem:[%s7 + $0x1c] sm:$0xf]
    %v845 = vld [vmem:[%s8] sm:$0x1]
    %v847 = vperm.slane %v845, 0
    %v857 = vunpack.c.l.b16 %v837
    %v858 = vunpack.c.l.b16 %v838
    %v859 = vunpack.c.l.b16 %v839
    %v860 = vunpack.c.l.b16 %v840
    %v861 = vunpack.c.l.b16 %v841
    %v862 = vunpack.c.l.b16 %v842
    %v863 = vunpack.c.l.b16 %v843
    %v864 = vunpack.c.l.b16 %v844
    %v865 = vpack.c.b16 %v858, %v857
    %v866 = vpack.c.b16 %v860, %v859
    %v867 = vpack.c.b16 %v862, %v861
    %v868 = vpack.c.b16 %v864, %v863
    %vm873 = vcmask 523264
    %v875 = vsel %vm873, %v836, 0
    %877 = vmatpush.bf16.msra.mxu0 0
    %878 = vmatpush.bf16.msra.mxu0 0
    %879 = vmatpush.bf16.msra.mxu0 0
    %880 = vmatpush.bf16.msra.mxu0 0
    %881 = vmatpush.bf16.msra.mxu0 %v868
    %882 = vmatpush.bf16.msra.mxu0 %v867
    %883 = vmatpush.bf16.msra.mxu0 %v866
    %884 = vmatpush.bf16.msra.mxu0 %v865
    %885 = vmatmul.bf16.gmra.mxu0 %v875
    %v886 = vpop.f32.mrf.mxu0
    %v887 = vadd.f32 %v847, %v886
    %v888 = vpop.f32.mrf.mxu0
    %v889 = vadd.f32 %v847, %v888
    %890 = vdwg.mxu0
    %v891 = vadd.f32 %v794, %v887
    %v892 = vadd.f32 %v795, %v889
    %v893 = vld [vmem:[%s11] sm:$0x1]
    %v894 = vld [vmem:[%s12] sm:$0x1]
    %v895 = vsel %vm85, %v891, 0.0
    %896 = vadd.xlane.f32.xlu0 %v895
    %v897 = vpop.xlane.xlu0 %896
    %v898 = vsel %vm85, %v892, 0.0
    %899 = vadd.xlane.f32.xlu0 %v898
    %v900 = vpop.xlane.xlu0 %899
    %v901 = vmul.f32 %v897, %v747
    %v902 = vmul.f32 %v900, %v747
    %v903 = vsub.f32 %v891, %v901
    %v904 = vsub.f32 %v892, %v902
    %v905 = vmul.f32 %v903, %v903
    %v906 = vmul.f32 %v904, %v904
    %v907 = vsel %vm85, %v905, 0.0
    %908 = vadd.xlane.f32.xlu0 %v907
    %v909 = vpop.xlane.xlu0 %908
    %v910 = vsel %vm85, %v906, 0.0
    %911 = vadd.xlane.f32.xlu0 %v910
    %v912 = vpop.xlane.xlu0 %911
    %v913 = vmul.f32 %v909, %v747
    %v914 = vmul.f32 %v912, %v747
    %v915 = vadd.f32 %v913, 1e-05
    %v916 = vadd.f32 %v914, 1e-05
    %v917 = vrsqrt.pop %v915
    %v918 = vmul.f32 %v917, %v915
    %v919 = vmul.f32 %v918, %v917
    %v920 = vmul.f32 0.5, %v919
    %v921 = vsub.f32 1.5, %v920
    %v922 = vmul.f32 %v917, %v921
    %vm923 = vweird.f32 %v915
    %vm924 = vweird.f32 %v917
    %vm925 = vmor %vm923, %vm924
    %v926 = vsel %vm925, %v917, %v922
    %v927 = vrsqrt.pop %v916
    %v928 = vmul.f32 %v927, %v916
    %v929 = vmul.f32 %v928, %v927
    %v930 = vmul.f32 0.5, %v929
    %v931 = vsub.f32 1.5, %v930
    %v932 = vmul.f32 %v927, %v931
    %vm933 = vweird.f32 %v916
    %vm934 = vweird.f32 %v927
    %vm935 = vmor %vm933, %vm934
    %v936 = vsel %vm935, %v927, %v932
    %v937 = vmul.f32 %v903, %v926
    %v938 = vmul.f32 %v904, %v936
    %v940 = vperm.slane %v893, 0
    %v942 = vmul.f32 %v937, %v940
    %v943 = vmul.f32 %v938, %v940
    %v945 = vperm.slane %v894, 0
    %v947 = vadd.f32 %v942, %v945
    %v948 = vadd.f32 %v943, %v945
    %949 = vst.msk [vmem:[#allocation5] sm:$0xff] %vm85, %v947
    %950 = vst.msk [vmem:[#allocation5 + $0x8] sm:$0xff] %vm85, %v948
    // Predicated region
    $region58: #{tpu_custom_call.1} parent=1 // pred_check
      _
    $region59: #{tpu_custom_call.1} parent=1 // pred_check_branch
      %952 = sbr.rel (0) target = $region61
    $region60: #{tpu_custom_call.1} parent=1 // pred_region
      %954 = vsyncadd [#allocation4], 0
      %s955 = sshll.u32 [#allocation5], 4
      %s956 = int_to_ptr.vmem [resolvable:$true] %s955
      %s957 = sshll.u32 %s13, 4
      %s958 = int_to_ptr.hbm [resolvable:$true] %s957
      %963 = dma.vmem_to_hbm [thread:$0]  %s956, 256, %s958, [#allocation4], 128, 128, 8
    $region61: #{tpu_custom_call.1} parent=1 // pred_fallthru
      _
    // Predicated region
    $region62: #{tpu_custom_call.1} parent=1 // pred_check
      _
    $region63: #{tpu_custom_call.1} parent=1 // pred_check_branch
      %965 = sbr.rel (0) target = $region65
    $region64: #{tpu_custom_call.1} parent=1 // pred_region
      %967 = dma.done [#allocation4], 256
    $region65: #{tpu_custom_call.1} parent=1 // pred_fallthru
      _
    %968 = vsyncpa [#allocation3], 1
    %969 = vsyncpa [#allocation4], 1

</llo_original>
